<compile_context>
chip_gen: v7x
topology: tpu7x:2x2x1
jax: 0.10.0
libtpu: 0.0.40
codegen_flags: <defaults>
</compile_context>

<pallas_src>
import functools

import numpy as np
import jax
import jax.numpy as jnp
from jax import lax
from jax.experimental import pallas as pl
from jax.experimental.pallas import tpu as pltpu


LANE = 128  # TPU lane width; K1 / M1 are padded to multiples of this.


# --------------------------------------------------------------------------------------
# Wrapper-side layout helpers (pure layout plumbing, zero FLOPs).
# --------------------------------------------------------------------------------------
def _im2col(xpad, ksize, stride, dilation, out_sp):
    """Patch matrix P[K^3*Cin, M] (row = tap*Cin + ci, col = b,do,ho,wo flat)."""
    cin = xpad.shape[-1]
    do_, ho_, wo_ = out_sp
    cols = []
    for kd in range(ksize):
        d0 = kd * dilation
        for kh in range(ksize):
            h0 = kh * dilation
            for kw in range(ksize):
                w0 = kw * dilation
                blk = xpad[:,
                           d0:d0 + (do_ - 1) * stride + 1:stride,
                           h0:h0 + (ho_ - 1) * stride + 1:stride,
                           w0:w0 + (wo_ - 1) * stride + 1:stride,
                           :]                            # (B, Do, Ho, Wo, Cin)
                cols.append(blk)
    pat = jnp.stack(cols, axis=0)                        # (K^3, B, Do, Ho, Wo, Cin)
    pat = jnp.moveaxis(pat, -1, 1)                       # (K^3, Cin, B, Do, Ho, Wo)
    return pat.reshape(ksize ** 3 * cin, -1)             # (K, M)


def _effective_weight(w, in_sp, out_sp, batch, stride, padding, dilation, m_prev):
    """Fold a layer's im2col gather into its weights (static, numpy, trace-time only).

    Returns eff[c_in, n_prev, c_out*M_out + m_out] such that
        conv(prev)[c_out, m_out] = sum_{c_in, n} prev[c_in, n] * eff[c_in, n, c_out*M_out + m_out]
    where n_prev / m_out are the flat (b, z, y, x) site indices of the previous / current
    layer's output.  Rows beyond the real site count (lane padding) stay zero.
    """
    K = w.shape[0]
    cin, cout = w.shape[3], w.shape[4]
    Di, Hi, Wi = in_sp
    Do, Ho, Wo = out_sp
    m_out_total = batch * Do * Ho * Wo
    eff = np.zeros((cin, m_prev, cout * m_out_total), np.float32)
    col_c = np.arange(cout) * m_out_total
    for kd in range(K):
        for kh in range(K):
            for kw in range(K):
                tap_w = w[kd, kh, kw]                    # (cin, cout)
                for b in range(batch):
                    for do in range(Do):
                        di = do * stride + kd * dilation - padding
                        if di < 0 or di >= Di:
                            continue
                        for ho in range(Ho):
                            hi = ho * stride + kh * dilation - padding
                            if hi < 0 or hi >= Hi:
                                continue
                            for wo in range(Wo):
                                wi = wo * stride + kw * dilation - padding
                                if wi < 0 or wi >= Wi:
                                    continue
                                n = ((b * Di + di) * Hi + hi) * Wi + wi
                                m = ((b * Do + do) * Ho + ho) * Wo + wo
                                eff[:, n, col_c + m] += tap_w
    return eff


# --------------------------------------------------------------------------------------
# Fused Pallas kernel.
# --------------------------------------------------------------------------------------
def _build_fused_kernel(num_layers, chain):
    """Kernel refs: (w1t, p1, eff_2, ..., eff_N, out).

    chain: list of (c_prev, m_prev, c_out, m_out) for layers 2..N.
    """

    def kernel(*refs):
        w1t_ref, p1_ref = refs[0], refs[1]
        eff_refs = refs[2:2 + (num_layers - 1)]
        out_ref = refs[2 + (num_layers - 1)]

        # Layer 1: one MXU matmul, fused spatial M in lanes, f32 accumulate.
        y = jnp.dot(w1t_ref[...], p1_ref[...],
                    preferred_element_type=jnp.float32)            # (C1, M1p)

        if num_layers == 1:
            out_ref[...] = y
            return

        prev = y
        prev_is_2d = True          # (C_prev, M_prev) for stage 2, (1, C_prev*M_prev) after
        for li, (c_prev, m_prev, c_out, m_out) in enumerate(chain):
            prev_bf = prev.astype(jnp.bfloat16)
            eff_ref = eff_refs[li]
            acc = jnp.zeros((1, c_out * m_out), jnp.float32)
            for c in range(c_prev):                                 # static unroll
                if prev_is_2d:
                    row = prev_bf[c:c + 1, :]                       # (1, M_prev) sublane slice
                else:
                    row = prev_bf[:, c * m_prev:(c + 1) * m_prev]   # (1, M_prev) lane slice
                acc = acc + jnp.dot(row, eff_ref[c],
                                    preferred_element_type=jnp.float32)
            prev = acc                                              # (1, C_out*M_out)
            prev_is_2d = False

        out_ref[...] = prev

    return kernel


# --------------------------------------------------------------------------------------
# Module wrapper.
# --------------------------------------------------------------------------------------
class SparseConv3dPallas:
    """JAX/Pallas equivalent of SparseConv3dTestTorch (densified semantics)."""

    def __init__(self, num_layers, ndim, shape, in_channels, out_channels,
                 kernel_size, stride, padding, dilation, key):
        assert ndim == 3
        self.shape = tuple(shape)            # (D, H, W)
        self.ksize = kernel_size
        self.stride = stride
        self.padding = padding
        self.dilation = dilation
        self.weights = []                    # numpy (k, k, k, cin, cout)
        self.spatial = [self.shape]          # spatial[i] = input spatial of layer i
        cin = in_channels
        sp = self.shape
        for _ in range(num_layers):
            key, sub = jax.random.split(key)
            fan_in = cin * kernel_size ** 3
            w = jax.random.normal(
                sub, (kernel_size, kernel_size, kernel_size, cin, out_channels),
                jnp.float32) * (1.0 / np.sqrt(fan_in))
            self.weights.append(np.asarray(w))
            cin = out_channels
            sp = tuple(self._out_sp(sp))
            self.spatial.append(sp)

    def _out_sp(self, sp):
        k, s, p, d = self.ksize, self.stride, self.padding, self.dilation
        return [(x + 2 * p - d * (k - 1) - 1) // s + 1 for x in sp]

    def __call__(self, features, coors, batch_size):
        coors = coors.astype(jnp.int32)
        D, H, W = self.shape
        cin = self.weights[0].shape[3]
        k, s, p, d = self.ksize, self.stride, self.padding, self.dilation

        # Densify sparse (features, coors) -> NDHWC (XLA scatter).
        dense = jnp.zeros((batch_size, D, H, W, cin), jnp.float32)
        dense = dense.at[coors[:, 0], coors[:, 1], coors[:, 2], coors[:, 3]].set(
            features.astype(jnp.float32))

        # --- Layer-1 im2col in the wrapper (single layout pass) -----------------------
        sp1 = self.spatial[1]
        xpad = jnp.pad(dense, ((0, 0), (p, p), (p, p), (p, p), (0, 0)))
        p1 = _im2col(xpad, k, s, d, sp1)                     # (K1, M1)
        k1, m1 = p1.shape
        k1p = pl.cdiv(k1, LANE) * LANE                       # 108 -> 128 (MXU-friendly)
        m1p = pl.cdiv(m1, LANE) * LANE                       # lane-dense M
        p1 = jnp.pad(p1, ((0, k1p - k1), (0, m1p - m1))).astype(jnp.bfloat16)

        c1 = self.weights[0].shape[4]
        w1t_np = np.zeros((c1, k1p), np.float32)
        w1t_np[:, :k1] = self.weights[0].reshape(k1, c1).T
        w1t = jnp.asarray(w1t_np, jnp.bfloat16)

        # --- Layers 2..N: fold gather into weights (static preprocessing) -------------
        effs, chain = [], []
        c_prev, m_prev = c1, m1p
        for li in range(1, len(self.weights)):
            sp_in, sp_out = self.spatial[li], self.spatial[li + 1]
            w = self.weights[li]
            c_out = w.shape[4]
            m_out = batch_size * int(np.prod(sp_out))
            eff = _effective_weight(w, sp_in, sp_out, batch_size, s, p, d, m_prev)
            effs.append(jnp.asarray(eff, jnp.bfloat16))      # (c_prev, m_prev, c_out*m_out)
            chain.append((c_prev, m_prev, c_out, m_out))
            c_prev, m_prev = c_out, m_out

        # --- Single fused pallas_call --------------------------------------------------
        num_layers = len(self.weights)
        kernel = _build_fused_kernel(num_layers, chain)

        if num_layers == 1:
            out_shape = jax.ShapeDtypeStruct((c1, m1p), jnp.float32)
            out_spec = pl.BlockSpec((c1, m1p), lambda i: (0, 0))
        else:
            n_last = chain[-1][2] * chain[-1][3]
            out_shape = jax.ShapeDtypeStruct((1, n_last), jnp.float32)
            out_spec = pl.BlockSpec((1, n_last), lambda i: (0, 0))

        in_specs = [pl.BlockSpec(tuple(w1t.shape), lambda i: (0, 0)),
                    pl.BlockSpec(tuple(p1.shape), lambda i: (0, 0))]
        for e in effs:
            in_specs.append(pl.BlockSpec(tuple(e.shape), lambda i: (0, 0, 0)))

        out = pl.pallas_call(
            kernel,
            out_shape=out_shape,
            grid=(1,),
            in_specs=in_specs,
            out_specs=out_spec,
            compiler_params=pltpu.CompilerParams(
                dimension_semantics=("arbitrary",)),
        )(w1t, p1, *effs)

        # --- Single final (C, M) -> NCDHW transpose ------------------------------------
        sp_last = self.spatial[-1]
        c_last = self.weights[-1].shape[4]
        if num_layers == 1:
            out = out[:, :m1]
        out = out.reshape(c_last, batch_size, *sp_last)
        return jnp.transpose(out, (1, 0, 2, 3, 4))


# --------------------------------------------------------------------------------------
# Driver / self-test.
# --------------------------------------------------------------------------------------
if __name__ == "__main__":
    key = jax.random.PRNGKey(0)
    batch_size = 2
    shape = (8, 8, 8)                        # (D, H, W)
    in_channels, out_channels = 4, 8
    num_layers, ksize, stride, padding, dilation = 2, 3, 2, 1, 1
    n_per_batch = 32

    key, k_model, k_feat, k_c0, k_c1 = jax.random.split(key, 5)
    model = SparseConv3dPallas(num_layers, 3, shape, in_channels, out_channels,
                               ksize, stride, padding, dilation, k_model)

    D, H, W = shape
    coors_list = []
    for b, kc in enumerate((k_c0, k_c1)):
        flat = jax.random.permutation(kc, D * H * W)[:n_per_batch]
        z, y, x = jnp.unravel_index(flat, (D, H, W))
        bcol = jnp.full((n_per_batch,), b, jnp.int32)
        coors_list.append(jnp.stack([bcol, z, y, x], axis=1))
    coors = jnp.concatenate(coors_list, axis=0).astype(jnp.int32)
    features = jax.random.normal(k_feat, (coors.shape[0], in_channels), jnp.float32)

    fwd = jax.jit(functools.partial(model.__call__, batch_size=batch_size))
    out = fwd(features, coors)
    out = jax.block_until_ready(out)

    # Reference: densify + stacked dense conv3d via lax (ground truth).
    dense = jnp.zeros((batch_size, D, H, W, in_channels), jnp.float32)
    dense = dense.at[coors[:, 0], coors[:, 1], coors[:, 2], coors[:, 3]].set(features)
    ref = dense
    for w in model.weights:
        ref = lax.conv_general_dilated(
            ref, jnp.asarray(w), window_strides=(stride,) * 3,
            padding=[(padding, padding)] * 3,
            rhs_dilation=(dilation,) * 3,
            dimension_numbers=("NDHWC", "DHWIO", "NDHWC"),
            precision=lax.Precision.HIGHEST)
    ref = jnp.transpose(ref, (0, 4, 1, 2, 3))

    assert out.shape == ref.shape, (out.shape, ref.shape)
    err = float(jnp.max(jnp.abs(out - ref)))
    assert err < 5e-2, f"max abs error {err}"
    print("KERNEL_OK")
</pallas_src>

<mosaic_0001>
module attributes {stable_mosaic.version = 11 : i64} {
  func.func @kernel(%arg0: i32, %arg1: memref<8x128xbf16, #tpu.memory_space<vmem>>, %arg2: memref<128x128xbf16, #tpu.memory_space<vmem>>, %arg3: memref<8x128x128xbf16, #tpu.memory_space<vmem>>, %arg4: memref<1x128xf32, #tpu.memory_space<vmem>>) attributes {dimension_semantics = [#tpu.dimension_semantics<arbitrary>], iteration_bounds = array<i64: 1>, scalar_prefetch = 0 : i64, scratch_operands = 0 : i64, tpu.core_type = #tpu.core_type<tc>, window_params = [{pipeline_mode = #tpu.pipeline_mode<synchronous>, transform_indices = @transform_0, window_bounds = array<i64: 8, 128>}, {pipeline_mode = #tpu.pipeline_mode<synchronous>, transform_indices = @transform_1, window_bounds = array<i64: 128, 128>}, {pipeline_mode = #tpu.pipeline_mode<synchronous>, transform_indices = @transform_2, window_bounds = array<i64: 8, 128, 128>}, {pipeline_mode = #tpu.pipeline_mode<synchronous>, transform_indices = @transform_3, window_bounds = array<i64: 1, 128>}]} {
    %c0 = arith.constant 0 : index
    %c0_0 = arith.constant 0 : index
    %0 = vector.load %arg1[%c0, %c0_0] : memref<8x128xbf16, #tpu.memory_space<vmem>>, vector<8x128xbf16>
    %c0_1 = arith.constant 0 : index
    %c0_2 = arith.constant 0 : index
    %1 = vector.load %arg2[%c0_1, %c0_2] : memref<128x128xbf16, #tpu.memory_space<vmem>>, vector<128x128xbf16>
    %cst = arith.constant dense<0.000000e+00> : vector<8x128xf32>
    %2 = tpu.matmul %0, %1, %cst {dimension_numbers = #tpu.dot_dimension_numbers<[1], [0], [0], [1], [0, 0, 1, 1], [], []>} : vector<8x128xbf16>, vector<128x128xbf16>, vector<8x128xf32> -> vector<8x128xf32>
    %3 = arith.truncf %2 : vector<8x128xf32> to vector<8x128xbf16>
    %cst_3 = arith.constant 0.000000e+00 : f32
    %4 = vector.broadcast %cst_3 : f32 to vector<1x128xf32>
    %5 = vector.extract_strided_slice %3 {offsets = [0, 0], sizes = [1, 128], strides = [1, 1]} : vector<8x128xbf16> to vector<1x128xbf16>
    %c0_4 = arith.constant 0 : index
    %c0_5 = arith.constant 0 : index
    %c0_6 = arith.constant 0 : index
    %6 = vector.load %arg3[%c0_4, %c0_5, %c0_6] : memref<8x128x128xbf16, #tpu.memory_space<vmem>>, vector<1x128x128xbf16>
    %7 = vector.shape_cast %6 : vector<1x128x128xbf16> to vector<128x128xbf16>
    %cst_7 = arith.constant dense<0.000000e+00> : vector<1x128xf32>
    %8 = tpu.matmul %5, %7, %cst_7 {dimension_numbers = #tpu.dot_dimension_numbers<[1], [0], [0], [1], [0, 0, 1, 1], [], []>} : vector<1x128xbf16>, vector<128x128xbf16>, vector<1x128xf32> -> vector<1x128xf32>
    %9 = arith.addf %4, %8 : vector<1x128xf32>
    %10 = vector.extract_strided_slice %3 {offsets = [1, 0], sizes = [1, 128], strides = [1, 1]} : vector<8x128xbf16> to vector<1x128xbf16>
    %c1 = arith.constant 1 : index
    %c0_8 = arith.constant 0 : index
    %c0_9 = arith.constant 0 : index
    %11 = vector.load %arg3[%c1, %c0_8, %c0_9] : memref<8x128x128xbf16, #tpu.memory_space<vmem>>, vector<1x128x128xbf16>
    %12 = vector.shape_cast %11 : vector<1x128x128xbf16> to vector<128x128xbf16>
    %cst_10 = arith.constant dense<0.000000e+00> : vector<1x128xf32>
    %13 = tpu.matmul %10, %12, %cst_10 {dimension_numbers = #tpu.dot_dimension_numbers<[1], [0], [0], [1], [0, 0, 1, 1], [], []>} : vector<1x128xbf16>, vector<128x128xbf16>, vector<1x128xf32> -> vector<1x128xf32>
    %14 = arith.addf %9, %13 : vector<1x128xf32>
    %15 = vector.extract_strided_slice %3 {offsets = [2, 0], sizes = [1, 128], strides = [1, 1]} : vector<8x128xbf16> to vector<1x128xbf16>
    %c2 = arith.constant 2 : index
    %c0_11 = arith.constant 0 : index
    %c0_12 = arith.constant 0 : index
    %16 = vector.load %arg3[%c2, %c0_11, %c0_12] : memref<8x128x128xbf16, #tpu.memory_space<vmem>>, vector<1x128x128xbf16>
    %17 = vector.shape_cast %16 : vector<1x128x128xbf16> to vector<128x128xbf16>
    %cst_13 = arith.constant dense<0.000000e+00> : vector<1x128xf32>
    %18 = tpu.matmul %15, %17, %cst_13 {dimension_numbers = #tpu.dot_dimension_numbers<[1], [0], [0], [1], [0, 0, 1, 1], [], []>} : vector<1x128xbf16>, vector<128x128xbf16>, vector<1x128xf32> -> vector<1x128xf32>
    %19 = arith.addf %14, %18 : vector<1x128xf32>
    %20 = vector.extract_strided_slice %3 {offsets = [3, 0], sizes = [1, 128], strides = [1, 1]} : vector<8x128xbf16> to vector<1x128xbf16>
    %c3 = arith.constant 3 : index
    %c0_14 = arith.constant 0 : index
    %c0_15 = arith.constant 0 : index
    %21 = vector.load %arg3[%c3, %c0_14, %c0_15] : memref<8x128x128xbf16, #tpu.memory_space<vmem>>, vector<1x128x128xbf16>
    %22 = vector.shape_cast %21 : vector<1x128x128xbf16> to vector<128x128xbf16>
    %cst_16 = arith.constant dense<0.000000e+00> : vector<1x128xf32>
    %23 = tpu.matmul %20, %22, %cst_16 {dimension_numbers = #tpu.dot_dimension_numbers<[1], [0], [0], [1], [0, 0, 1, 1], [], []>} : vector<1x128xbf16>, vector<128x128xbf16>, vector<1x128xf32> -> vector<1x128xf32>
    %24 = arith.addf %19, %23 : vector<1x128xf32>
    %25 = vector.extract_strided_slice %3 {offsets = [4, 0], sizes = [1, 128], strides = [1, 1]} : vector<8x128xbf16> to vector<1x128xbf16>
    %c4 = arith.constant 4 : index
    %c0_17 = arith.constant 0 : index
    %c0_18 = arith.constant 0 : index
    %26 = vector.load %arg3[%c4, %c0_17, %c0_18] : memref<8x128x128xbf16, #tpu.memory_space<vmem>>, vector<1x128x128xbf16>
    %27 = vector.shape_cast %26 : vector<1x128x128xbf16> to vector<128x128xbf16>
    %cst_19 = arith.constant dense<0.000000e+00> : vector<1x128xf32>
    %28 = tpu.matmul %25, %27, %cst_19 {dimension_numbers = #tpu.dot_dimension_numbers<[1], [0], [0], [1], [0, 0, 1, 1], [], []>} : vector<1x128xbf16>, vector<128x128xbf16>, vector<1x128xf32> -> vector<1x128xf32>
    %29 = arith.addf %24, %28 : vector<1x128xf32>
    %30 = vector.extract_strided_slice %3 {offsets = [5, 0], sizes = [1, 128], strides = [1, 1]} : vector<8x128xbf16> to vector<1x128xbf16>
    %c5 = arith.constant 5 : index
    %c0_20 = arith.constant 0 : index
    %c0_21 = arith.constant 0 : index
    %31 = vector.load %arg3[%c5, %c0_20, %c0_21] : memref<8x128x128xbf16, #tpu.memory_space<vmem>>, vector<1x128x128xbf16>
    %32 = vector.shape_cast %31 : vector<1x128x128xbf16> to vector<128x128xbf16>
    %cst_22 = arith.constant dense<0.000000e+00> : vector<1x128xf32>
    %33 = tpu.matmul %30, %32, %cst_22 {dimension_numbers = #tpu.dot_dimension_numbers<[1], [0], [0], [1], [0, 0, 1, 1], [], []>} : vector<1x128xbf16>, vector<128x128xbf16>, vector<1x128xf32> -> vector<1x128xf32>
    %34 = arith.addf %29, %33 : vector<1x128xf32>
    %35 = vector.extract_strided_slice %3 {offsets = [6, 0], sizes = [1, 128], strides = [1, 1]} : vector<8x128xbf16> to vector<1x128xbf16>
    %c6 = arith.constant 6 : index
    %c0_23 = arith.constant 0 : index
    %c0_24 = arith.constant 0 : index
    %36 = vector.load %arg3[%c6, %c0_23, %c0_24] : memref<8x128x128xbf16, #tpu.memory_space<vmem>>, vector<1x128x128xbf16>
    %37 = vector.shape_cast %36 : vector<1x128x128xbf16> to vector<128x128xbf16>
    %cst_25 = arith.constant dense<0.000000e+00> : vector<1x128xf32>
    %38 = tpu.matmul %35, %37, %cst_25 {dimension_numbers = #tpu.dot_dimension_numbers<[1], [0], [0], [1], [0, 0, 1, 1], [], []>} : vector<1x128xbf16>, vector<128x128xbf16>, vector<1x128xf32> -> vector<1x128xf32>
    %39 = arith.addf %34, %38 : vector<1x128xf32>
    %40 = vector.extract_strided_slice %3 {offsets = [7, 0], sizes = [1, 128], strides = [1, 1]} : vector<8x128xbf16> to vector<1x128xbf16>
    %c7 = arith.constant 7 : index
    %c0_26 = arith.constant 0 : index
    %c0_27 = arith.constant 0 : index
    %41 = vector.load %arg3[%c7, %c0_26, %c0_27] : memref<8x128x128xbf16, #tpu.memory_space<vmem>>, vector<1x128x128xbf16>
    %42 = vector.shape_cast %41 : vector<1x128x128xbf16> to vector<128x128xbf16>
    %cst_28 = arith.constant dense<0.000000e+00> : vector<1x128xf32>
    %43 = tpu.matmul %40, %42, %cst_28 {dimension_numbers = #tpu.dot_dimension_numbers<[1], [0], [0], [1], [0, 0, 1, 1], [], []>} : vector<1x128xbf16>, vector<128x128xbf16>, vector<1x128xf32> -> vector<1x128xf32>
    %44 = arith.addf %39, %43 : vector<1x128xf32>
    %c0_29 = arith.constant 0 : index
    %c0_30 = arith.constant 0 : index
    %45 = vector.load %arg4[%c0_29, %c0_30] : memref<1x128xf32, #tpu.memory_space<vmem>>, vector<1x128xf32>
    tpu.vector_store %arg4[%c0_29, %c0_30], %44 {strides = array<i32>} : memref<1x128xf32, #tpu.memory_space<vmem>>, vector<1x128xf32>,
    return
  }
  func.func @transform_0(%arg0: i32) -> (i32, i32) {
    %c0_i32 = arith.constant 0 : i32
    %c0_i32_0 = arith.constant 0 : i32
    %c0_i32_1 = arith.constant 0 : i32
    return %c0_i32, %c0_i32_0 : i32, i32
  }
  func.func @transform_1(%arg0: i32) -> (i32, i32) {
    %c0_i32 = arith.constant 0 : i32
    %c0_i32_0 = arith.constant 0 : i32
    %c0_i32_1 = arith.constant 0 : i32
    return %c0_i32, %c0_i32_0 : i32, i32
  }
  func.func @transform_2(%arg0: i32) -> (i32, i32, i32) {
    %c0_i32 = arith.constant 0 : i32
    %c0_i32_0 = arith.constant 0 : i32
    %c0_i32_1 = arith.constant 0 : i32
    %c0_i32_2 = arith.constant 0 : i32
    return %c0_i32, %c0_i32_0, %c0_i32_1 : i32, i32, i32
  }
  func.func @transform_3(%arg0: i32) -> (i32, i32) {
    %c0_i32 = arith.constant 0 : i32
    %c0_i32_0 = arith.constant 0 : i32
    %c0_i32_1 = arith.constant 0 : i32
    return %c0_i32, %c0_i32_0 : i32, i32
  }
}

</mosaic_0001>

<llo_original>
// kernel: a_call__.1
$region0: #{a_call__.1}
  #allocation0 [shape = 'u32[]', space=smem, size = 0x4, offset = 0x4, fixed_abs, tag = 'smem constant byte address 0x4 - core index']
  #allocation1 [shape = 'u32[144,128]{1,0:T(1,128)}', space=vmem, size = 0x12000, scoped, tag = 'internal scratch']
  %s0 = inlined_call_operand.vmem [shape: bf16[8,128], index: 0, kind: input, shape index: {}]
  %s1 = inlined_call_operand.vmem [shape: bf16[128,128], index: 1, kind: input, shape index: {}]
  %s2 = inlined_call_operand.vmem [shape: bf16[8,128,128], index: 2, kind: input, shape index: {}]
  %s3 = inlined_call_operand.vmem [shape: f32[1,128], index: 3, kind: output, shape index: {}]
  %s4 = sld [smem:[#allocation0]]
  $region22: #{a_call__.1} parent=0
    _
  %s6 = ssub.s32 1, %s4
  %s7 = scalar_select 0, %s6, %s4
  // Predicated region
  $region2: #{a_call__.1} parent=0 // pred_check
    _
  $region3: #{a_call__.1} parent=0 // pred_check_branch
    %9 = sbr.rel (0) target = $region5
  $region4: #{a_call__.1} parent=0 // pred_region
    _
  $region5: #{a_call__.1} parent=0 // pred_fallthru
    _
  // Predicated region
  $region6: #{a_call__.1} parent=0 // pred_check
    _
  $region7: #{a_call__.1} parent=0 // pred_check_branch
    %11 = sbr.rel (0) target = $region9
  $region8: #{a_call__.1} parent=0 // pred_region
    _
  $region9: #{a_call__.1} parent=0 // pred_fallthru
    _
  // Predicated region
  $region10: #{a_call__.1} parent=0 // pred_check
    _
  $region11: #{a_call__.1} parent=0 // pred_check_branch
    %13 = sbr.rel (0) target = $region13
  $region12: #{a_call__.1} parent=0 // pred_region
    _
  $region13: #{a_call__.1} parent=0 // pred_fallthru
    _
  %v15 = vld [vmem:[%s0] sm:$0xf]
  %v16 = vld [vmem:[%s1] sm:$0xf]
  %v17 = vld [vmem:[%s1 + $0x4] sm:$0xf]
  %v18 = vld [vmem:[%s1 + $0x8] sm:$0xf]
  %v19 = vld [vmem:[%s1 + $0xc] sm:$0xf]
  %v20 = vld [vmem:[%s1 + $0x10] sm:$0xf]
  %v21 = vld [vmem:[%s1 + $0x14] sm:$0xf]
  %v22 = vld [vmem:[%s1 + $0x18] sm:$0xf]
  %v23 = vld [vmem:[%s1 + $0x1c] sm:$0xf]
  %v24 = vld [vmem:[%s1 + $0x20] sm:$0xf]
  %v25 = vld [vmem:[%s1 + $0x24] sm:$0xf]
  %v26 = vld [vmem:[%s1 + $0x28] sm:$0xf]
  %v27 = vld [vmem:[%s1 + $0x2c] sm:$0xf]
  %v28 = vld [vmem:[%s1 + $0x30] sm:$0xf]
  %v29 = vld [vmem:[%s1 + $0x34] sm:$0xf]
  %v30 = vld [vmem:[%s1 + $0x38] sm:$0xf]
  %v31 = vld [vmem:[%s1 + $0x3c] sm:$0xf]
  %v48 = vunpack.c.l.b16 %v16
  %v49 = vunpack.c.l.b16 %v17
  %v50 = vunpack.c.l.b16 %v18
  %v51 = vunpack.c.l.b16 %v19
  %v52 = vunpack.c.l.b16 %v20
  %v53 = vunpack.c.l.b16 %v21
  %v54 = vunpack.c.l.b16 %v22
  %v55 = vunpack.c.l.b16 %v23
  %v56 = vunpack.c.l.b16 %v24
  %v57 = vunpack.c.l.b16 %v25
  %v58 = vunpack.c.l.b16 %v26
  %v59 = vunpack.c.l.b16 %v27
  %v60 = vunpack.c.l.b16 %v28
  %v61 = vunpack.c.l.b16 %v29
  %v62 = vunpack.c.l.b16 %v30
  %v63 = vunpack.c.l.b16 %v31
  %v64 = vpack.c.b16 %v49, %v48
  %v65 = vpack.c.b16 %v51, %v50
  %v66 = vpack.c.b16 %v53, %v52
  %v67 = vpack.c.b16 %v55, %v54
  %v68 = vpack.c.b16 %v57, %v56
  %v69 = vpack.c.b16 %v59, %v58
  %v70 = vpack.c.b16 %v61, %v60
  %v71 = vpack.c.b16 %v63, %v62
  %80 = vmatprep.subr.bf16.mxu0 0
  %81 = vmatpush1.bf16.msra.mxu0 %v64
  %82 = vmatprep.subr.bf16.mxu0 0
  %83 = vmatpush1.bf16.msra.mxu0 %v65
  %84 = vmatprep.subr.bf16.mxu0 0
  %85 = vmatpush1.bf16.msra.mxu0 %v66
  %86 = vmatprep.subr.bf16.mxu0 0
  %87 = vmatpush1.bf16.msra.mxu0 %v67
  %88 = vmatprep.subr.bf16.mxu0 0
  %89 = vmatpush1.bf16.msra.mxu0 %v68
  %90 = vmatprep.subr.bf16.mxu0 0
  %91 = vmatpush1.bf16.msra.mxu0 %v69
  %92 = vmatprep.subr.bf16.mxu0 0
  %93 = vmatpush1.bf16.msra.mxu0 %v70
  %94 = vmatprep.subr.bf16.mxu0 0
  %95 = vmatpush1.bf16.msra.mxu0 %v71
  %96 = vmatprep.subr.bf16.mxu0 0
  %97 = vmatpush1.bf16.msra.mxu0 0
  %98 = vmatprep.subr.bf16.mxu0 0
  %99 = vmatpush1.bf16.msra.mxu0 0
  %100 = vmatprep.subr.bf16.mxu0 0
  %101 = vmatpush1.bf16.msra.mxu0 0
  %102 = vmatprep.subr.bf16.mxu0 0
  %103 = vmatpush1.bf16.msra.mxu0 0
  %104 = vmatprep.subr.bf16.mxu0 0
  %105 = vmatpush1.bf16.msra.mxu0 0
  %106 = vmatprep.subr.bf16.mxu0 0
  %107 = vmatpush1.bf16.msra.mxu0 0
  %108 = vmatprep.subr.bf16.mxu0 0
  %109 = vmatpush1.bf16.msra.mxu0 0
  %110 = vmatprep.subr.bf16.mxu0 0
  %111 = vmatpush1.bf16.msra.mxu0 0
  %112 = vmatprep.mubr.bf16.mxu0 0
  %113 = vmatmul.mubr.bf16.gmra.mrb[0].mxu0 %v15
  %v114 = vpop.f32.mrb[0].mxu0
  %v115 = vadd.f32 0.0, %v114
  %v116 = vpop.f32.mrb[0].mxu0
  %v117 = vpop.f32.mrb[0].mxu0
  %v118 = vpop.f32.mrb[0].mxu0
  %119 = vdwg.mxu0
  %v120 = vpack.c.bf16 %v115, %v115
  %v121 = vld [vmem:[%s2] sm:$0xf]
  %v122 = vld [vmem:[%s2 + $0x4] sm:$0xf]
  %v123 = vld [vmem:[%s2 + $0x8] sm:$0xf]
  %v124 = vld [vmem:[%s2 + $0xc] sm:$0xf]
  %v125 = vld [vmem:[%s2 + $0x10] sm:$0xf]
  %v126 = vld [vmem:[%s2 + $0x14] sm:$0xf]
  %v127 = vld [vmem:[%s2 + $0x18] sm:$0xf]
  %v128 = vld [vmem:[%s2 + $0x1c] sm:$0xf]
  %v129 = vld [vmem:[%s2 + $0x20] sm:$0xf]
  %v130 = vld [vmem:[%s2 + $0x24] sm:$0xf]
  %v131 = vld [vmem:[%s2 + $0x28] sm:$0xf]
  %v132 = vld [vmem:[%s2 + $0x2c] sm:$0xf]
  %v133 = vld [vmem:[%s2 + $0x30] sm:$0xf]
  %v134 = vld [vmem:[%s2 + $0x34] sm:$0xf]
  %v135 = vld [vmem:[%s2 + $0x38] sm:$0xf]
  %v136 = vld [vmem:[%s2 + $0x3c] sm:$0xf]
  %s137 = scalar_lea.vmem %s2, 64
  %v138 = vld [vmem:[%s137] sm:$0xf]
  %v139 = vld [vmem:[%s137 + $0x4] sm:$0xf]
  %v140 = vld [vmem:[%s137 + $0x8] sm:$0xf]
  %v141 = vld [vmem:[%s137 + $0xc] sm:$0xf]
  %v142 = vld [vmem:[%s137 + $0x10] sm:$0xf]
  %v143 = vld [vmem:[%s137 + $0x14] sm:$0xf]
  %v144 = vld [vmem:[%s137 + $0x18] sm:$0xf]
  %v145 = vld [vmem:[%s137 + $0x1c] sm:$0xf]
  %v146 = vld [vmem:[%s137 + $0x20] sm:$0xf]
  %v147 = vld [vmem:[%s137 + $0x24] sm:$0xf]
  %v148 = vld [vmem:[%s137 + $0x28] sm:$0xf]
  %v149 = vld [vmem:[%s137 + $0x2c] sm:$0xf]
  %v150 = vld [vmem:[%s137 + $0x30] sm:$0xf]
  %v151 = vld [vmem:[%s137 + $0x34] sm:$0xf]
  %v152 = vld [vmem:[%s137 + $0x38] sm:$0xf]
  %v153 = vld [vmem:[%s137 + $0x3c] sm:$0xf]
  %v155 = vshrl.u32 %v120, 16
  %v174 = vunpack.c.l.b16 %v138
  %v175 = vunpack.c.l.b16 %v139
  %v176 = vunpack.c.l.b16 %v140
  %v177 = vunpack.c.l.b16 %v141
  %v178 = vunpack.c.l.b16 %v142
  %v179 = vunpack.c.l.b16 %v143
  %v180 = vunpack.c.l.b16 %v144
  %v181 = vunpack.c.l.b16 %v145
  %v182 = vunpack.c.l.b16 %v146
  %v183 = vunpack.c.l.b16 %v147
  %v184 = vunpack.c.l.b16 %v148
  %v185 = vunpack.c.l.b16 %v149
  %v186 = vunpack.c.l.b16 %v150
  %v187 = vunpack.c.l.b16 %v151
  %v188 = vunpack.c.l.b16 %v152
  %v189 = vunpack.c.l.b16 %v153
  %v190 = vpack.c.b16 %v175, %v174
  %v191 = vpack.c.b16 %v177, %v176
  %v192 = vpack.c.b16 %v179, %v178
  %v193 = vpack.c.b16 %v181, %v180
  %v194 = vpack.c.b16 %v183, %v182
  %v195 = vpack.c.b16 %v185, %v184
  %v196 = vpack.c.b16 %v187, %v186
  %v197 = vpack.c.b16 %v189, %v188
  %206 = vmatprep.subr.bf16.mxu0 0
  %207 = vmatpush1.bf16.msra.mxu0 %v190
  %208 = vmatprep.subr.bf16.mxu0 0
  %209 = vmatpush1.bf16.msra.mxu0 %v191
  %210 = vmatprep.subr.bf16.mxu0 0
  %211 = vmatpush1.bf16.msra.mxu0 %v192
  %212 = vmatprep.subr.bf16.mxu0 0
  %213 = vmatpush1.bf16.msra.mxu0 %v193
  %214 = vmatprep.subr.bf16.mxu0 0
  %215 = vmatpush1.bf16.msra.mxu0 %v194
  %216 = vmatprep.subr.bf16.mxu0 0
  %217 = vmatpush1.bf16.msra.mxu0 %v195
  %218 = vmatprep.subr.bf16.mxu0 0
  %219 = vmatpush1.bf16.msra.mxu0 %v196
  %220 = vmatprep.subr.bf16.mxu0 0
  %221 = vmatpush1.bf16.msra.mxu0 %v197
  %222 = vmatprep.subr.bf16.mxu0 0
  %223 = vmatpush1.bf16.msra.mxu0 0
  %224 = vmatprep.subr.bf16.mxu0 0
  %225 = vmatpush1.bf16.msra.mxu0 0
  %226 = vmatprep.subr.bf16.mxu0 0
  %227 = vmatpush1.bf16.msra.mxu0 0
  %228 = vmatprep.subr.bf16.mxu0 0
  %229 = vmatpush1.bf16.msra.mxu0 0
  %230 = vmatprep.subr.bf16.mxu0 0
  %231 = vmatpush1.bf16.msra.mxu0 0
  %232 = vmatprep.subr.bf16.mxu0 0
  %233 = vmatpush1.bf16.msra.mxu0 0
  %234 = vmatprep.subr.bf16.mxu0 0
  %235 = vmatpush1.bf16.msra.mxu0 0
  %236 = vmatprep.subr.bf16.mxu0 0
  %237 = vmatpush1.bf16.msra.mxu0 0
  %238 = vmatprep.mubr.bf16.mxu0 0
  %239 = vmatmul.mubr.bf16.gmra.mrb[0].mxu0 %v155
  %v240 = vpop.f32.mrb[0].mxu0
  %v241 = vadd.f32 0.0, %v240
  %v242 = vpop.f32.mrb[0].mxu0
  %v243 = vpop.f32.mrb[0].mxu0
  %v244 = vpop.f32.mrb[0].mxu0
  %245 = vdwg.mxu0
  %v262 = vunpack.c.l.b16 %v121
  %v263 = vunpack.c.l.b16 %v122
  %v264 = vunpack.c.l.b16 %v123
  %v265 = vunpack.c.l.b16 %v124
  %v266 = vunpack.c.l.b16 %v125
  %v267 = vunpack.c.l.b16 %v126
  %v268 = vunpack.c.l.b16 %v127
  %v269 = vunpack.c.l.b16 %v128
  %v270 = vunpack.c.l.b16 %v129
  %v271 = vunpack.c.l.b16 %v130
  %v272 = vunpack.c.l.b16 %v131
  %v273 = vunpack.c.l.b16 %v132
  %v274 = vunpack.c.l.b16 %v133
  %v275 = vunpack.c.l.b16 %v134
  %v276 = vunpack.c.l.b16 %v135
  %v277 = vunpack.c.l.b16 %v136
  %v278 = vpack.c.b16 %v263, %v262
  %v279 = vpack.c.b16 %v265, %v264
  %v280 = vpack.c.b16 %v267, %v266
  %v281 = vpack.c.b16 %v269, %v268
  %v282 = vpack.c.b16 %v271, %v270
  %v283 = vpack.c.b16 %v273, %v272
  %v284 = vpack.c.b16 %v275, %v274
  %v285 = vpack.c.b16 %v277, %v276
  %294 = vmatprep.subr.bf16.mxu0 0
  %295 = vmatpush1.bf16.msra.mxu0 %v278
  %296 = vmatprep.subr.bf16.mxu0 0
  %297 = vmatpush1.bf16.msra.mxu0 %v279
  %298 = vmatprep.subr.bf16.mxu0 0
  %299 = vmatpush1.bf16.msra.mxu0 %v280
  %300 = vmatprep.subr.bf16.mxu0 0
  %301 = vmatpush1.bf16.msra.mxu0 %v281
  %302 = vmatprep.subr.bf16.mxu0 0
  %303 = vmatpush1.bf16.msra.mxu0 %v282
  %304 = vmatprep.subr.bf16.mxu0 0
  %305 = vmatpush1.bf16.msra.mxu0 %v283
  %306 = vmatprep.subr.bf16.mxu0 0
  %307 = vmatpush1.bf16.msra.mxu0 %v284
  %308 = vmatprep.subr.bf16.mxu0 0
  %309 = vmatpush1.bf16.msra.mxu0 %v285
  %310 = vmatprep.subr.bf16.mxu0 0
  %311 = vmatpush1.bf16.msra.mxu0 0
  %312 = vmatprep.subr.bf16.mxu0 0
  %313 = vmatpush1.bf16.msra.mxu0 0
  %314 = vmatprep.subr.bf16.mxu0 0
  %315 = vmatpush1.bf16.msra.mxu0 0
  %316 = vmatprep.subr.bf16.mxu0 0
  %317 = vmatpush1.bf16.msra.mxu0 0
  %318 = vmatprep.subr.bf16.mxu0 0
  %319 = vmatpush1.bf16.msra.mxu0 0
  %320 = vmatprep.subr.bf16.mxu0 0
  %321 = vmatpush1.bf16.msra.mxu0 0
  %322 = vmatprep.subr.bf16.mxu0 0
  %323 = vmatpush1.bf16.msra.mxu0 0
  %324 = vmatprep.subr.bf16.mxu0 0
  %325 = vmatpush1.bf16.msra.mxu0 0
  %326 = vmatprep.mubr.bf16.mxu0 0
  %327 = vmatmul.mubr.bf16.gmra.mrb[0].mxu0 %v120
  %v328 = vpop.f32.mrb[0].mxu0
  %v329 = vadd.f32 %v241, %v328
  %v330 = vpop.f32.mrb[0].mxu0
  %v331 = vpop.f32.mrb[0].mxu0
  %v332 = vpop.f32.mrb[0].mxu0
  %333 = vdwg.mxu0
  %s334 = scalar_lea.vmem %s2, 128
  %v335 = vld [vmem:[%s334] sm:$0xf]
  %v336 = vld [vmem:[%s334 + $0x4] sm:$0xf]
  %v337 = vld [vmem:[%s334 + $0x8] sm:$0xf]
  %v338 = vld [vmem:[%s334 + $0xc] sm:$0xf]
  %v339 = vld [vmem:[%s334 + $0x10] sm:$0xf]
  %v340 = vld [vmem:[%s334 + $0x14] sm:$0xf]
  %v341 = vld [vmem:[%s334 + $0x18] sm:$0xf]
  %v342 = vld [vmem:[%s334 + $0x1c] sm:$0xf]
  %v343 = vld [vmem:[%s334 + $0x20] sm:$0xf]
  %v344 = vld [vmem:[%s334 + $0x24] sm:$0xf]
  %v345 = vld [vmem:[%s334 + $0x28] sm:$0xf]
  %v346 = vld [vmem:[%s334 + $0x2c] sm:$0xf]
  %v347 = vld [vmem:[%s334 + $0x30] sm:$0xf]
  %v348 = vld [vmem:[%s334 + $0x34] sm:$0xf]
  %v349 = vld [vmem:[%s334 + $0x38] sm:$0xf]
  %v350 = vld [vmem:[%s334 + $0x3c] sm:$0xf]
  %v352 = vrot.slane %v120, 1
  %v370 = vunpack.c.l.b16 %v335
  %v371 = vunpack.c.l.b16 %v336
  %v372 = vunpack.c.l.b16 %v337
  %v373 = vunpack.c.l.b16 %v338
  %v374 = vunpack.c.l.b16 %v339
  %v375 = vunpack.c.l.b16 %v340
  %v376 = vunpack.c.l.b16 %v341
  %v377 = vunpack.c.l.b16 %v342
  %v378 = vunpack.c.l.b16 %v343
  %v379 = vunpack.c.l.b16 %v344
  %v380 = vunpack.c.l.b16 %v345
  %v381 = vunpack.c.l.b16 %v346
  %v382 = vunpack.c.l.b16 %v347
  %v383 = vunpack.c.l.b16 %v348
  %v384 = vunpack.c.l.b16 %v349
  %v385 = vunpack.c.l.b16 %v350
  %v386 = vpack.c.b16 %v371, %v370
  %v387 = vpack.c.b16 %v373, %v372
  %v388 = vpack.c.b16 %v375, %v374
  %v389 = vpack.c.b16 %v377, %v376
  %v390 = vpack.c.b16 %v379, %v378
  %v391 = vpack.c.b16 %v381, %v380
  %v392 = vpack.c.b16 %v383, %v382
  %v393 = vpack.c.b16 %v385, %v384
  %402 = vmatprep.subr.bf16.mxu0 0
  %403 = vmatpush1.bf16.msra.mxu0 %v386
  %404 = vmatprep.subr.bf16.mxu0 0
  %405 = vmatpush1.bf16.msra.mxu0 %v387
  %406 = vmatprep.subr.bf16.mxu0 0
  %407 = vmatpush1.bf16.msra.mxu0 %v388
  %408 = vmatprep.subr.bf16.mxu0 0
  %409 = vmatpush1.bf16.msra.mxu0 %v389
  %410 = vmatprep.subr.bf16.mxu0 0
  %411 = vmatpush1.bf16.msra.mxu0 %v390
  %412 = vmatprep.subr.bf16.mxu0 0
  %413 = vmatpush1.bf16.msra.mxu0 %v391
  %414 = vmatprep.subr.bf16.mxu0 0
  %415 = vmatpush1.bf16.msra.mxu0 %v392
  %416 = vmatprep.subr.bf16.mxu0 0
  %417 = vmatpush1.bf16.msra.mxu0 %v393
  %418 = vmatprep.subr.bf16.mxu0 0
  %419 = vmatpush1.bf16.msra.mxu0 0
  %420 = vmatprep.subr.bf16.mxu0 0
  %421 = vmatpush1.bf16.msra.mxu0 0
  %422 = vmatprep.subr.bf16.mxu0 0
  %423 = vmatpush1.bf16.msra.mxu0 0
  %424 = vmatprep.subr.bf16.mxu0 0
  %425 = vmatpush1.bf16.msra.mxu0 0
  %426 = vmatprep.subr.bf16.mxu0 0
  %427 = vmatpush1.bf16.msra.mxu0 0
  %428 = vmatprep.subr.bf16.mxu0 0
  %429 = vmatpush1.bf16.msra.mxu0 0
  %430 = vmatprep.subr.bf16.mxu0 0
  %431 = vmatpush1.bf16.msra.mxu0 0
  %432 = vmatprep.subr.bf16.mxu0 0
  %433 = vmatpush1.bf16.msra.mxu0 0
  %434 = vmatprep.mubr.bf16.mxu0 0
  %435 = vmatmul.mubr.bf16.gmra.mrb[0].mxu0 %v352
  %v436 = vpop.f32.mrb[0].mxu0
  %v437 = vadd.f32 0.0, %v436
  %v438 = vpop.f32.mrb[0].mxu0
  %v439 = vpop.f32.mrb[0].mxu0
  %v440 = vpop.f32.mrb[0].mxu0
  %441 = vdwg.mxu0
  %v442 = vadd.f32 %v329, %v437
  %s443 = scalar_lea.vmem %s2, 192
  %v444 = vld [vmem:[%s443] sm:$0xf]
  %v445 = vld [vmem:[%s443 + $0x4] sm:$0xf]
  %v446 = vld [vmem:[%s443 + $0x8] sm:$0xf]
  %v447 = vld [vmem:[%s443 + $0xc] sm:$0xf]
  %v448 = vld [vmem:[%s443 + $0x10] sm:$0xf]
  %v449 = vld [vmem:[%s443 + $0x14] sm:$0xf]
  %v450 = vld [vmem:[%s443 + $0x18] sm:$0xf]
  %v451 = vld [vmem:[%s443 + $0x1c] sm:$0xf]
  %v452 = vld [vmem:[%s443 + $0x20] sm:$0xf]
  %v453 = vld [vmem:[%s443 + $0x24] sm:$0xf]
  %v454 = vld [vmem:[%s443 + $0x28] sm:$0xf]
  %v455 = vld [vmem:[%s443 + $0x2c] sm:$0xf]
  %v456 = vld [vmem:[%s443 + $0x30] sm:$0xf]
  %v457 = vld [vmem:[%s443 + $0x34] sm:$0xf]
  %v458 = vld [vmem:[%s443 + $0x38] sm:$0xf]
  %v459 = vld [vmem:[%s443 + $0x3c] sm:$0xf]
  %v460 = vrot.slane %v155, 1
  %v478 = vunpack.c.l.b16 %v444
  %v479 = vunpack.c.l.b16 %v445
  %v480 = vunpack.c.l.b16 %v446
  %v481 = vunpack.c.l.b16 %v447
  %v482 = vunpack.c.l.b16 %v448
  %v483 = vunpack.c.l.b16 %v449
  %v484 = vunpack.c.l.b16 %v450
  %v485 = vunpack.c.l.b16 %v451
  %v486 = vunpack.c.l.b16 %v452
  %v487 = vunpack.c.l.b16 %v453
  %v488 = vunpack.c.l.b16 %v454
  %v489 = vunpack.c.l.b16 %v455
  %v490 = vunpack.c.l.b16 %v456
  %v491 = vunpack.c.l.b16 %v457
  %v492 = vunpack.c.l.b16 %v458
  %v493 = vunpack.c.l.b16 %v459
  %v494 = vpack.c.b16 %v479, %v478
  %v495 = vpack.c.b16 %v481, %v480
  %v496 = vpack.c.b16 %v483, %v482
  %v497 = vpack.c.b16 %v485, %v484
  %v498 = vpack.c.b16 %v487, %v486
  %v499 = vpack.c.b16 %v489, %v488
  %v500 = vpack.c.b16 %v491, %v490
  %v501 = vpack.c.b16 %v493, %v492
  %510 = vmatprep.subr.bf16.mxu0 0
  %511 = vmatpush1.bf16.msra.mxu0 %v494
  %512 = vmatprep.subr.bf16.mxu0 0
  %513 = vmatpush1.bf16.msra.mxu0 %v495
  %514 = vmatprep.subr.bf16.mxu0 0
  %515 = vmatpush1.bf16.msra.mxu0 %v496
  %516 = vmatprep.subr.bf16.mxu0 0
  %517 = vmatpush1.bf16.msra.mxu0 %v497
  %518 = vmatprep.subr.bf16.mxu0 0
  %519 = vmatpush1.bf16.msra.mxu0 %v498
  %520 = vmatprep.subr.bf16.mxu0 0
  %521 = vmatpush1.bf16.msra.mxu0 %v499
  %522 = vmatprep.subr.bf16.mxu0 0
  %523 = vmatpush1.bf16.msra.mxu0 %v500
  %524 = vmatprep.subr.bf16.mxu0 0
  %525 = vmatpush1.bf16.msra.mxu0 %v501
  %526 = vmatprep.subr.bf16.mxu0 0
  %527 = vmatpush1.bf16.msra.mxu0 0
  %528 = vmatprep.subr.bf16.mxu0 0
  %529 = vmatpush1.bf16.msra.mxu0 0
  %530 = vmatprep.subr.bf16.mxu0 0
  %531 = vmatpush1.bf16.msra.mxu0 0
  %532 = vmatprep.subr.bf16.mxu0 0
  %533 = vmatpush1.bf16.msra.mxu0 0
  %534 = vmatprep.subr.bf16.mxu0 0
  %535 = vmatpush1.bf16.msra.mxu0 0
  %536 = vmatprep.subr.bf16.mxu0 0
  %537 = vmatpush1.bf16.msra.mxu0 0
  %538 = vmatprep.subr.bf16.mxu0 0
  %539 = vmatpush1.bf16.msra.mxu0 0
  %540 = vmatprep.subr.bf16.mxu0 0
  %541 = vmatpush1.bf16.msra.mxu0 0
  %542 = vmatprep.mubr.bf16.mxu0 0
  %543 = vmatmul.mubr.bf16.gmra.mrb[0].mxu0 %v460
  %v544 = vpop.f32.mrb[0].mxu0
  %v545 = vadd.f32 0.0, %v544
  %v546 = vpop.f32.mrb[0].mxu0
  %v547 = vpop.f32.mrb[0].mxu0
  %v548 = vpop.f32.mrb[0].mxu0
  %549 = vdwg.mxu0
  %v550 = vadd.f32 %v442, %v545
  %s551 = scalar_lea.vmem %s2, 256
  %v552 = vld [vmem:[%s551] sm:$0xf]
  %v553 = vld [vmem:[%s551 + $0x4] sm:$0xf]
  %v554 = vld [vmem:[%s551 + $0x8] sm:$0xf]
  %v555 = vld [vmem:[%s551 + $0xc] sm:$0xf]
  %v556 = vld [vmem:[%s551 + $0x10] sm:$0xf]
  %v557 = vld [vmem:[%s551 + $0x14] sm:$0xf]
  %v558 = vld [vmem:[%s551 + $0x18] sm:$0xf]
  %v559 = vld [vmem:[%s551 + $0x1c] sm:$0xf]
  %v560 = vld [vmem:[%s551 + $0x20] sm:$0xf]
  %v561 = vld [vmem:[%s551 + $0x24] sm:$0xf]
  %v562 = vld [vmem:[%s551 + $0x28] sm:$0xf]
  %v563 = vld [vmem:[%s551 + $0x2c] sm:$0xf]
  %v564 = vld [vmem:[%s551 + $0x30] sm:$0xf]
  %v565 = vld [vmem:[%s551 + $0x34] sm:$0xf]
  %v566 = vld [vmem:[%s551 + $0x38] sm:$0xf]
  %v567 = vld [vmem:[%s551 + $0x3c] sm:$0xf]
  %v568 = vrot.slane %v120, 2
  %v586 = vunpack.c.l.b16 %v552
  %v587 = vunpack.c.l.b16 %v553
  %v588 = vunpack.c.l.b16 %v554
  %v589 = vunpack.c.l.b16 %v555
  %v590 = vunpack.c.l.b16 %v556
  %v591 = vunpack.c.l.b16 %v557
  %v592 = vunpack.c.l.b16 %v558
  %v593 = vunpack.c.l.b16 %v559
  %v594 = vunpack.c.l.b16 %v560
  %v595 = vunpack.c.l.b16 %v561
  %v596 = vunpack.c.l.b16 %v562
  %v597 = vunpack.c.l.b16 %v563
  %v598 = vunpack.c.l.b16 %v564
  %v599 = vunpack.c.l.b16 %v565
  %v600 = vunpack.c.l.b16 %v566
  %v601 = vunpack.c.l.b16 %v567
  %v602 = vpack.c.b16 %v587, %v586
  %v603 = vpack.c.b16 %v589, %v588
  %v604 = vpack.c.b16 %v591, %v590
  %v605 = vpack.c.b16 %v593, %v592
  %v606 = vpack.c.b16 %v595, %v594
  %v607 = vpack.c.b16 %v597, %v596
  %v608 = vpack.c.b16 %v599, %v598
  %v609 = vpack.c.b16 %v601, %v600
  %618 = vmatprep.subr.bf16.mxu0 0
  %619 = vmatpush1.bf16.msra.mxu0 %v602
  %620 = vmatprep.subr.bf16.mxu0 0
  %621 = vmatpush1.bf16.msra.mxu0 %v603
  %622 = vmatprep.subr.bf16.mxu0 0
  %623 = vmatpush1.bf16.msra.mxu0 %v604
  %624 = vmatprep.subr.bf16.mxu0 0
  %625 = vmatpush1.bf16.msra.mxu0 %v605
  %626 = vmatprep.subr.bf16.mxu0 0
  %627 = vmatpush1.bf16.msra.mxu0 %v606
  %628 = vmatprep.subr.bf16.mxu0 0
  %629 = vmatpush1.bf16.msra.mxu0 %v607
  %630 = vmatprep.subr.bf16.mxu0 0
  %631 = vmatpush1.bf16.msra.mxu0 %v608
  %632 = vmatprep.subr.bf16.mxu0 0
  %633 = vmatpush1.bf16.msra.mxu0 %v609
  %634 = vmatprep.subr.bf16.mxu0 0
  %635 = vmatpush1.bf16.msra.mxu0 0
  %636 = vmatprep.subr.bf16.mxu0 0
  %637 = vmatpush1.bf16.msra.mxu0 0
  %638 = vmatprep.subr.bf16.mxu0 0
  %639 = vmatpush1.bf16.msra.mxu0 0
  %640 = vmatprep.subr.bf16.mxu0 0
  %641 = vmatpush1.bf16.msra.mxu0 0
  %642 = vmatprep.subr.bf16.mxu0 0
  %643 = vmatpush1.bf16.msra.mxu0 0
  %644 = vmatprep.subr.bf16.mxu0 0
  %645 = vmatpush1.bf16.msra.mxu0 0
  %646 = vmatprep.subr.bf16.mxu0 0
  %647 = vmatpush1.bf16.msra.mxu0 0
  %648 = vmatprep.subr.bf16.mxu0 0
  %649 = vmatpush1.bf16.msra.mxu0 0
  %650 = vmatprep.mubr.bf16.mxu0 0
  %651 = vmatmul.mubr.bf16.gmra.mrb[0].mxu0 %v568
  %v652 = vpop.f32.mrb[0].mxu0
  %v653 = vadd.f32 0.0, %v652
  %v654 = vpop.f32.mrb[0].mxu0
  %v655 = vpop.f32.mrb[0].mxu0
  %v656 = vpop.f32.mrb[0].mxu0
  %657 = vdwg.mxu0
  %v658 = vadd.f32 %v550, %v653
  %s659 = scalar_lea.vmem %s2, 320
  %v660 = vld [vmem:[%s659] sm:$0xf]
  %v661 = vld [vmem:[%s659 + $0x4] sm:$0xf]
  %v662 = vld [vmem:[%s659 + $0x8] sm:$0xf]
  %v663 = vld [vmem:[%s659 + $0xc] sm:$0xf]
  %v664 = vld [vmem:[%s659 + $0x10] sm:$0xf]
  %v665 = vld [vmem:[%s659 + $0x14] sm:$0xf]
  %v666 = vld [vmem:[%s659 + $0x18] sm:$0xf]
  %v667 = vld [vmem:[%s659 + $0x1c] sm:$0xf]
  %v668 = vld [vmem:[%s659 + $0x20] sm:$0xf]
  %v669 = vld [vmem:[%s659 + $0x24] sm:$0xf]
  %v670 = vld [vmem:[%s659 + $0x28] sm:$0xf]
  %v671 = vld [vmem:[%s659 + $0x2c] sm:$0xf]
  %v672 = vld [vmem:[%s659 + $0x30] sm:$0xf]
  %v673 = vld [vmem:[%s659 + $0x34] sm:$0xf]
  %v674 = vld [vmem:[%s659 + $0x38] sm:$0xf]
  %v675 = vld [vmem:[%s659 + $0x3c] sm:$0xf]
  %v676 = vrot.slane %v155, 2
  %v694 = vunpack.c.l.b16 %v660
  %v695 = vunpack.c.l.b16 %v661
  %v696 = vunpack.c.l.b16 %v662
  %v697 = vunpack.c.l.b16 %v663
  %v698 = vunpack.c.l.b16 %v664
  %v699 = vunpack.c.l.b16 %v665
  %v700 = vunpack.c.l.b16 %v666
  %v701 = vunpack.c.l.b16 %v667
  %v702 = vunpack.c.l.b16 %v668
  %v703 = vunpack.c.l.b16 %v669
  %v704 = vunpack.c.l.b16 %v670
  %v705 = vunpack.c.l.b16 %v671
  %v706 = vunpack.c.l.b16 %v672
  %v707 = vunpack.c.l.b16 %v673
  %v708 = vunpack.c.l.b16 %v674
  %v709 = vunpack.c.l.b16 %v675
  %v710 = vpack.c.b16 %v695, %v694
  %v711 = vpack.c.b16 %v697, %v696
  %v712 = vpack.c.b16 %v699, %v698
  %v713 = vpack.c.b16 %v701, %v700
  %v714 = vpack.c.b16 %v703, %v702
  %v715 = vpack.c.b16 %v705, %v704
  %v716 = vpack.c.b16 %v707, %v706
  %v717 = vpack.c.b16 %v709, %v708
  %726 = vmatprep.subr.bf16.mxu0 0
  %727 = vmatpush1.bf16.msra.mxu0 %v710
  %728 = vmatprep.subr.bf16.mxu0 0
  %729 = vmatpush1.bf16.msra.mxu0 %v711
  %730 = vmatprep.subr.bf16.mxu0 0
  %731 = vmatpush1.bf16.msra.mxu0 %v712
  %732 = vmatprep.subr.bf16.mxu0 0
  %733 = vmatpush1.bf16.msra.mxu0 %v713
  %734 = vmatprep.subr.bf16.mxu0 0
  %735 = vmatpush1.bf16.msra.mxu0 %v714
  %736 = vmatprep.subr.bf16.mxu0 0
  %737 = vmatpush1.bf16.msra.mxu0 %v715
  %738 = vmatprep.subr.bf16.mxu0 0
  %739 = vmatpush1.bf16.msra.mxu0 %v716
  %740 = vmatprep.subr.bf16.mxu0 0
  %741 = vmatpush1.bf16.msra.mxu0 %v717
  %742 = vmatprep.subr.bf16.mxu0 0
  %743 = vmatpush1.bf16.msra.mxu0 0
  %744 = vmatprep.subr.bf16.mxu0 0
  %745 = vmatpush1.bf16.msra.mxu0 0
  %746 = vmatprep.subr.bf16.mxu0 0
  %747 = vmatpush1.bf16.msra.mxu0 0
  %748 = vmatprep.subr.bf16.mxu0 0
  %749 = vmatpush1.bf16.msra.mxu0 0
  %750 = vmatprep.subr.bf16.mxu0 0
  %751 = vmatpush1.bf16.msra.mxu0 0
  %752 = vmatprep.subr.bf16.mxu0 0
  %753 = vmatpush1.bf16.msra.mxu0 0
  %754 = vmatprep.subr.bf16.mxu0 0
  %755 = vmatpush1.bf16.msra.mxu0 0
  %756 = vmatprep.subr.bf16.mxu0 0
  %757 = vmatpush1.bf16.msra.mxu0 0
  %758 = vmatprep.mubr.bf16.mxu0 0
  %759 = vmatmul.mubr.bf16.gmra.mrb[0].mxu0 %v676
  %v760 = vpop.f32.mrb[0].mxu0
  %v761 = vadd.f32 0.0, %v760
  %v762 = vpop.f32.mrb[0].mxu0
  %v763 = vpop.f32.mrb[0].mxu0
  %v764 = vpop.f32.mrb[0].mxu0
  %765 = vdwg.mxu0
  %v766 = vadd.f32 %v658, %v761
  %s767 = scalar_lea.vmem %s2, 384
  %v768 = vld [vmem:[%s767] sm:$0xf]
  %v769 = vld [vmem:[%s767 + $0x4] sm:$0xf]
  %v770 = vld [vmem:[%s767 + $0x8] sm:$0xf]
  %v771 = vld [vmem:[%s767 + $0xc] sm:$0xf]
  %v772 = vld [vmem:[%s767 + $0x10] sm:$0xf]
  %v773 = vld [vmem:[%s767 + $0x14] sm:$0xf]
  %v774 = vld [vmem:[%s767 + $0x18] sm:$0xf]
  %v775 = vld [vmem:[%s767 + $0x1c] sm:$0xf]
  %v776 = vld [vmem:[%s767 + $0x20] sm:$0xf]
  %v777 = vld [vmem:[%s767 + $0x24] sm:$0xf]
  %v778 = vld [vmem:[%s767 + $0x28] sm:$0xf]
  %v779 = vld [vmem:[%s767 + $0x2c] sm:$0xf]
  %v780 = vld [vmem:[%s767 + $0x30] sm:$0xf]
  %v781 = vld [vmem:[%s767 + $0x34] sm:$0xf]
  %v782 = vld [vmem:[%s767 + $0x38] sm:$0xf]
  %v783 = vld [vmem:[%s767 + $0x3c] sm:$0xf]
  %v784 = vrot.slane %v120, 3
  %v802 = vunpack.c.l.b16 %v768
  %v803 = vunpack.c.l.b16 %v769
  %v804 = vunpack.c.l.b16 %v770
  %v805 = vunpack.c.l.b16 %v771
  %v806 = vunpack.c.l.b16 %v772
  %v807 = vunpack.c.l.b16 %v773
  %v808 = vunpack.c.l.b16 %v774
  %v809 = vunpack.c.l.b16 %v775
  %v810 = vunpack.c.l.b16 %v776
  %v811 = vunpack.c.l.b16 %v777
  %v812 = vunpack.c.l.b16 %v778
  %v813 = vunpack.c.l.b16 %v779
  %v814 = vunpack.c.l.b16 %v780
  %v815 = vunpack.c.l.b16 %v781
  %v816 = vunpack.c.l.b16 %v782
  %v817 = vunpack.c.l.b16 %v783
  %v818 = vpack.c.b16 %v803, %v802
  %v819 = vpack.c.b16 %v805, %v804
  %v820 = vpack.c.b16 %v807, %v806
  %v821 = vpack.c.b16 %v809, %v808
  %v822 = vpack.c.b16 %v811, %v810
  %v823 = vpack.c.b16 %v813, %v812
  %v824 = vpack.c.b16 %v815, %v814
  %v825 = vpack.c.b16 %v817, %v816
  %834 = vmatprep.subr.bf16.mxu0 0
  %835 = vmatpush1.bf16.msra.mxu0 %v818
  %836 = vmatprep.subr.bf16.mxu0 0
  %837 = vmatpush1.bf16.msra.mxu0 %v819
  %838 = vmatprep.subr.bf16.mxu0 0
  %839 = vmatpush1.bf16.msra.mxu0 %v820
  %840 = vmatprep.subr.bf16.mxu0 0
  %841 = vmatpush1.bf16.msra.mxu0 %v821
  %842 = vmatprep.subr.bf16.mxu0 0
  %843 = vmatpush1.bf16.msra.mxu0 %v822
  %844 = vmatprep.subr.bf16.mxu0 0
  %845 = vmatpush1.bf16.msra.mxu0 %v823
  %846 = vmatprep.subr.bf16.mxu0 0
  %847 = vmatpush1.bf16.msra.mxu0 %v824
  %848 = vmatprep.subr.bf16.mxu0 0
  %849 = vmatpush1.bf16.msra.mxu0 %v825
  %850 = vmatprep.subr.bf16.mxu0 0
  %851 = vmatpush1.bf16.msra.mxu0 0
  %852 = vmatprep.subr.bf16.mxu0 0
  %853 = vmatpush1.bf16.msra.mxu0 0
  %854 = vmatprep.subr.bf16.mxu0 0
  %855 = vmatpush1.bf16.msra.mxu0 0
  %856 = vmatprep.subr.bf16.mxu0 0
  %857 = vmatpush1.bf16.msra.mxu0 0
  %858 = vmatprep.subr.bf16.mxu0 0
  %859 = vmatpush1.bf16.msra.mxu0 0
  %860 = vmatprep.subr.bf16.mxu0 0
  %861 = vmatpush1.bf16.msra.mxu0 0
  %862 = vmatprep.subr.bf16.mxu0 0
  %863 = vmatpush1.bf16.msra.mxu0 0
  %864 = vmatprep.subr.bf16.mxu0 0
  %865 = vmatpush1.bf16.msra.mxu0 0
  %866 = vmatprep.mubr.bf16.mxu0 0
  %867 = vmatmul.mubr.bf16.gmra.mrb[0].mxu0 %v784
  %v868 = vpop.f32.mrb[0].mxu0
  %v869 = vadd.f32 0.0, %v868
  %v870 = vpop.f32.mrb[0].mxu0
  %v871 = vpop.f32.mrb[0].mxu0
  %v872 = vpop.f32.mrb[0].mxu0
  %873 = vdwg.mxu0
  %v874 = vadd.f32 %v766, %v869
  %s875 = scalar_lea.vmem %s2, 448
  %v876 = vld [vmem:[%s875] sm:$0xf]
  %v877 = vld [vmem:[%s875 + $0x4] sm:$0xf]
  %v878 = vld [vmem:[%s875 + $0x8] sm:$0xf]
  %v879 = vld [vmem:[%s875 + $0xc] sm:$0xf]
  %v880 = vld [vmem:[%s875 + $0x10] sm:$0xf]
  %v881 = vld [vmem:[%s875 + $0x14] sm:$0xf]
  %v882 = vld [vmem:[%s875 + $0x18] sm:$0xf]
  %v883 = vld [vmem:[%s875 + $0x1c] sm:$0xf]
  %v884 = vld [vmem:[%s875 + $0x20] sm:$0xf]
  %v885 = vld [vmem:[%s875 + $0x24] sm:$0xf]
  %v886 = vld [vmem:[%s875 + $0x28] sm:$0xf]
  %v887 = vld [vmem:[%s875 + $0x2c] sm:$0xf]
  %v888 = vld [vmem:[%s875 + $0x30] sm:$0xf]
  %v889 = vld [vmem:[%s875 + $0x34] sm:$0xf]
  %v890 = vld [vmem:[%s875 + $0x38] sm:$0xf]
  %v891 = vld [vmem:[%s875 + $0x3c] sm:$0xf]
  %v892 = vrot.slane %v155, 3
  %v910 = vunpack.c.l.b16 %v876
  %v911 = vunpack.c.l.b16 %v877
  %v912 = vunpack.c.l.b16 %v878
  %v913 = vunpack.c.l.b16 %v879
  %v914 = vunpack.c.l.b16 %v880
  %v915 = vunpack.c.l.b16 %v881
  %v916 = vunpack.c.l.b16 %v882
  %v917 = vunpack.c.l.b16 %v883
  %v918 = vunpack.c.l.b16 %v884
  %v919 = vunpack.c.l.b16 %v885
  %v920 = vunpack.c.l.b16 %v886
  %v921 = vunpack.c.l.b16 %v887
  %v922 = vunpack.c.l.b16 %v888
  %v923 = vunpack.c.l.b16 %v889
  %v924 = vunpack.c.l.b16 %v890
  %v925 = vunpack.c.l.b16 %v891
  %v926 = vpack.c.b16 %v911, %v910
  %v927 = vpack.c.b16 %v913, %v912
  %v928 = vpack.c.b16 %v915, %v914
  %v929 = vpack.c.b16 %v917, %v916
  %v930 = vpack.c.b16 %v919, %v918
  %v931 = vpack.c.b16 %v921, %v920
  %v932 = vpack.c.b16 %v923, %v922
  %v933 = vpack.c.b16 %v925, %v924
  %942 = vmatprep.subr.bf16.mxu0 0
  %943 = vmatpush1.bf16.msra.mxu0 %v926
  %944 = vmatprep.subr.bf16.mxu0 0
  %945 = vmatpush1.bf16.msra.mxu0 %v927
  %946 = vmatprep.subr.bf16.mxu0 0
  %947 = vmatpush1.bf16.msra.mxu0 %v928
  %948 = vmatprep.subr.bf16.mxu0 0
  %949 = vmatpush1.bf16.msra.mxu0 %v929
  %950 = vmatprep.subr.bf16.mxu0 0
  %951 = vmatpush1.bf16.msra.mxu0 %v930
  %952 = vmatprep.subr.bf16.mxu0 0
  %953 = vmatpush1.bf16.msra.mxu0 %v931
  %954 = vmatprep.subr.bf16.mxu0 0
  %955 = vmatpush1.bf16.msra.mxu0 %v932
  %956 = vmatprep.subr.bf16.mxu0 0
  %957 = vmatpush1.bf16.msra.mxu0 %v933
  %958 = vmatprep.subr.bf16.mxu0 0
  %959 = vmatpush1.bf16.msra.mxu0 0
  %960 = vmatprep.subr.bf16.mxu0 0
  %961 = vmatpush1.bf16.msra.mxu0 0
  %962 = vmatprep.subr.bf16.mxu0 0
  %963 = vmatpush1.bf16.msra.mxu0 0
  %964 = vmatprep.subr.bf16.mxu0 0
  %965 = vmatpush1.bf16.msra.mxu0 0
  %966 = vmatprep.subr.bf16.mxu0 0
  %967 = vmatpush1.bf16.msra.mxu0 0
  %968 = vmatprep.subr.bf16.mxu0 0
  %969 = vmatpush1.bf16.msra.mxu0 0
  %970 = vmatprep.subr.bf16.mxu0 0
  %971 = vmatpush1.bf16.msra.mxu0 0
  %972 = vmatprep.subr.bf16.mxu0 0
  %973 = vmatpush1.bf16.msra.mxu0 0
  %974 = vmatprep.mubr.bf16.mxu0 0
  %975 = vmatmul.mubr.bf16.gmra.mrb[0].mxu0 %v892
  %v976 = vpop.f32.mrb[0].mxu0
  %v977 = vadd.f32 0.0, %v976
  %v978 = vpop.f32.mrb[0].mxu0
  %v979 = vpop.f32.mrb[0].mxu0
  %v980 = vpop.f32.mrb[0].mxu0
  %981 = vdwg.mxu0
  %v982 = vadd.f32 %v874, %v977
  %983 = vst [vmem:[%s3] sm:$0x1] %v982
  // Predicated region
  $region14: #{a_call__.1} parent=0 // pred_check
    _
  $region15: #{a_call__.1} parent=0 // pred_check_branch
    %985 = sbr.rel (0) target = $region17
  $region16: #{a_call__.1} parent=0 // pred_region
    _
  $region17: #{a_call__.1} parent=0 // pred_fallthru
    _
  // Predicated region
  $region18: #{a_call__.1} parent=0 // pred_check
    _
  $region19: #{a_call__.1} parent=0 // pred_check_branch
    %987 = sbr.rel (0) target = $region21
  $region20: #{a_call__.1} parent=0 // pred_region
    _
  $region21: #{a_call__.1} parent=0 // pred_fallthru
    _

</llo_original>
